<compile_context>
chip_gen: v5e
topology: v5e:2x2
jax: 0.10.0
libtpu: 0.0.40
codegen_flags: <defaults>
</compile_context>

<pallas_src>
import functools

import jax
import jax.numpy as jnp
from jax.experimental import pallas as pl
from jax.experimental.pallas import tpu as pltpu


def _multitask_kernel(h_ref, w_ref, b_ref, o_ref, *, n_a, n_b):
    # h_ref: (TB, S*H) bf16            -- lane-dense hidden slab (pool folded into W)
    # w_ref: (S*H, Cpad) bf16          -- tile(w_ab, S) / S, zero-padded columns
    # b_ref: (1, Cpad) f32             -- fused bias, zero-padded columns
    # o_ref: (TB, Cpad) f32            -- cols [0:n_a] task A, [n_a:n_a+n_b] task B
    logits = (
        jnp.dot(h_ref[...], w_ref[...], preferred_element_type=jnp.float32)
        + b_ref[...]
    )  # (TB, Cpad), f32 accumulation; equals (mean-pool @ W^T + b) for both heads

    # Per-head softmax via lane masks (keeps the output store lane-dense).
    col = jax.lax.broadcasted_iota(jnp.int32, logits.shape, 1)
    mask_a = col < n_a
    mask_b = jnp.logical_and(col >= n_a, col < n_a + n_b)
    mask_ab = jnp.logical_or(mask_a, mask_b)

    neg = jnp.float32(-1e30)
    masked = jnp.where(mask_ab, logits, neg)              # kill padded lanes pre-exp
    m_a = jnp.max(jnp.where(mask_a, logits, neg), axis=-1, keepdims=True)  # (TB, 1)
    m_b = jnp.max(jnp.where(mask_b, logits, neg), axis=-1, keepdims=True)  # (TB, 1)
    e = jnp.exp(masked - jnp.where(mask_a, m_a, m_b))     # padded lanes underflow to 0

    s_a = jnp.sum(jnp.where(mask_a, e, 0.0), axis=-1, keepdims=True)
    s_b = jnp.sum(jnp.where(mask_b, e, 0.0), axis=-1, keepdims=True)
    # Exact reciprocal: rows must sum to 1 (approx=True was the correctness bug).
    r_a = pl.reciprocal(s_a, approx=False)
    r_b = pl.reciprocal(s_b, approx=False)
    scale = jnp.where(mask_a, r_a, jnp.where(mask_b, r_b, 0.0))

    o_ref[...] = (e * scale).astype(o_ref.dtype)


def prepare_fused_head(w_a, b_a, w_b, b_b, seq_len):
    """Precompute (once, outside the per-call path) the fused, pool-folded head.

    w_a: (H, Ca), w_b: (H, Cb) are the transposed nn.Linear weights (x @ W^T + b).
    Returns (w_pool bf16 (S*H, Cpad), b_ab f32 (1, Cpad), Ca, Cb, Cpad).

    NOTE: folding the mean-pool into the weight (tile over S) is only worthwhile
    when H < 128 so the replicated weight stays tiny; for BERT-size H, pool in
    the kernel instead and keep a (H, Cpad) weight.
    """
    H, Ca = w_a.shape
    Cb = w_b.shape[1]
    Ctot = Ca + Cb
    Cpad = max(128, pl.cdiv(Ctot, 128) * 128)  # lane-dense combined output width

    w_ab = jnp.zeros((H, Cpad), jnp.float32)
    w_ab = w_ab.at[:, :Ca].set(w_a.astype(jnp.float32))
    w_ab = w_ab.at[:, Ca:Ctot].set(w_b.astype(jnp.float32))
    # Fold torch.mean(outputs, dim=1) into the matmul: replicate over S, scale 1/S.
    w_pool = (jnp.tile(w_ab, (seq_len, 1)) * (1.0 / seq_len)).astype(jnp.bfloat16)

    b_ab = jnp.zeros((1, Cpad), jnp.float32)
    b_ab = b_ab.at[0, :Ca].set(b_a.astype(jnp.float32))
    b_ab = b_ab.at[0, Ca:Ctot].set(b_b.astype(jnp.float32))
    return w_pool, b_ab, Ca, Cb, Cpad


def _round_up(x, m):
    return ((x + m - 1) // m) * m


def _vmem_budget_bytes():
    # Generation-aware budget (v5e/v6e: 128 MiB physical, v7x: 64 MiB per TC);
    # stay well inside the scoped default and leave headroom for double-buffering.
    try:
        cap = pltpu.get_tpu_info().vmem_capacity_bytes
    except Exception:
        cap = 64 << 20
    return int(min(cap // 2, 32 << 20))


def _pick_batch_tile(B, bytes_per_row, vmem_budget):
    # Size tiles by bytes, not by divisors of B: >= ~1 MiB of hidden per grid step
    # (amortizes the ~0.35us/step overhead) but <= ~budget/4 (double-buffered input
    # + resident weights + double-buffered output).
    min_block = 1 << 20
    max_block = max(min_block, vmem_budget // 4)
    target = min(max_block, max(min_block, bytes_per_row * 8))
    tb = max(8, (target // max(1, bytes_per_row)) // 8 * 8)
    return min(tb, _round_up(B, 8))


def multitask_heads(hidden_states, w_pool, b_ab, n_a, n_b, *, batch_tile=None):
    """hidden_states: (B, S, H); w_pool: (S*H, Cpad) bf16; b_ab: (1, Cpad) f32."""
    B, S, H = hidden_states.shape
    SH, Cpad = w_pool.shape
    assert SH == S * H, (SH, S, H)

    # Lane-dense bf16 stream: (B, S*H) fills the 128-lane vregs instead of 32/128.
    h2d = hidden_states.reshape(B, SH).astype(jnp.bfloat16)

    vmem_budget = _vmem_budget_bytes()
    if batch_tile is None:
        batch_tile = _pick_batch_tile(B, SH * h2d.dtype.itemsize, vmem_budget)
    TB = int(batch_tile)
    assert TB % 8 == 0, TB

    # Pad the batch up to a multiple of TB (odd batch sizes still pipeline).
    n_steps = pl.cdiv(B, TB)
    B_pad = n_steps * TB
    if B_pad != B:
        h2d = jnp.concatenate([h2d, jnp.zeros((B_pad - B, SH), h2d.dtype)], axis=0)

    kernel = functools.partial(_multitask_kernel, n_a=n_a, n_b=n_b)
    out = pl.pallas_call(
        kernel,
        out_shape=jax.ShapeDtypeStruct((B_pad, Cpad), jnp.float32),
        grid_spec=pltpu.PrefetchScalarGridSpec(
            num_scalar_prefetch=0,
            grid=(n_steps,),
            in_specs=[
                pl.BlockSpec((TB, SH), lambda i: (i, 0)),     # streamed, pipelined
                pl.BlockSpec((SH, Cpad), lambda i: (0, 0)),   # resident fused weight
                pl.BlockSpec((1, Cpad), lambda i: (0, 0)),    # resident fused bias
            ],
            out_specs=pl.BlockSpec((TB, Cpad), lambda i: (i, 0)),
        ),
        compiler_params=pltpu.CompilerParams(
            dimension_semantics=("parallel",),   # megacore-shard the batch loop
            vmem_limit_bytes=vmem_budget,
        ),
    )(h2d, w_pool, b_ab)

    return {
        "classifier_task_a": out[:B, :n_a],
        "classifier_task_b": out[:B, n_a:n_a + n_b],
    }


def synthetic_base_model(input_ids, attention_mask, embed_table):
    # Deterministic stand-in for base_model(...).last_hidden_state.
    # (attention_mask is accepted but, like the reference's unmasked torch.mean
    #  pooling, it does not affect the result.)
    del attention_mask
    return embed_table[input_ids]  # (B, S, H)


if __name__ == "__main__":
    # Small shapes consistent with the forward: seq=8, hidden=32,
    # num_classes_task_a=4, num_classes_task_b=6, vocab=100, batch=16.
    B, S, H = 16, 8, 32
    Ca, Cb = 4, 6
    VOCAB = 100

    key = jax.random.PRNGKey(0)
    k_emb, k_ids, k_wa, k_ba, k_wb, k_bb = jax.random.split(key, 6)

    # bf16 hidden states end-to-end into the kernel (halves HBM traffic).
    embed_table = (jax.random.normal(k_emb, (VOCAB, H), dtype=jnp.float32) * 0.1).astype(
        jnp.bfloat16
    )
    input_ids = jax.random.randint(k_ids, (B, S), 0, VOCAB, dtype=jnp.int32)
    attention_mask = jnp.ones((B, S), dtype=jnp.int32)

    # nn.Linear(H, C): weight (C, H), bias (C,).  Stored transposed as (H, C)
    # so the heads compute x @ W^T + b directly.
    w_a = (jax.random.normal(k_wa, (Ca, H), dtype=jnp.float32) * 0.05).T  # (H, Ca)
    b_a = jax.random.normal(k_ba, (Ca,), dtype=jnp.float32) * 0.05
    w_b = (jax.random.normal(k_wb, (Cb, H), dtype=jnp.float32) * 0.05).T  # (H, Cb)
    b_b = jax.random.normal(k_bb, (Cb,), dtype=jnp.float32) * 0.05

    # Precompute the fused / pool-folded head parameters ONCE (hoisted out of the
    # per-call path), then run the forward.
    w_pool, b_ab, n_a, n_b, _ = prepare_fused_head(w_a, b_a, w_b, b_b, seq_len=S)

    hidden = synthetic_base_model(input_ids, attention_mask, embed_table)  # (B,S,H) bf16
    out = multitask_heads(hidden, w_pool, b_ab, n_a, n_b)
    jax.block_until_ready(out)

    # Sanity check against plain-JAX reference (same bf16 hidden states, f32 weights;
    # kernel uses bf16 weights on the MXU -> slightly looser tolerance).
    pooled = jnp.mean(hidden.astype(jnp.float32), axis=1)
    ref_a = jax.nn.softmax(pooled @ w_a + b_a, axis=-1)
    ref_b = jax.nn.softmax(pooled @ w_b + b_b, axis=-1)

    assert out["classifier_task_a"].shape == (B, Ca)
    assert out["classifier_task_b"].shape == (B, Cb)
    assert jnp.allclose(out["classifier_task_a"], ref_a, atol=5e-3)
    assert jnp.allclose(out["classifier_task_b"], ref_b, atol=5e-3)
    # Exact reciprocal in the kernel -> rows sum to 1 tightly.
    assert jnp.allclose(jnp.sum(out["classifier_task_a"], axis=-1), 1.0, atol=1e-3)
    assert jnp.allclose(jnp.sum(out["classifier_task_b"], axis=-1), 1.0, atol=1e-3)

    print("KERNEL_OK")
</pallas_src>

<mosaic_0001>
module attributes {stable_mosaic.version = 11 : i64} {
  func.func @_multitask_kernel(%arg0: i32, %arg1: memref<16x256xbf16, #tpu.memory_space<vmem>>, %arg2: memref<256x128xbf16, #tpu.memory_space<vmem>>, %arg3: memref<1x128xf32, #tpu.memory_space<vmem>>, %arg4: memref<16x128xf32, #tpu.memory_space<vmem>>) attributes {dimension_semantics = [#tpu.dimension_semantics<parallel>], iteration_bounds = array<i64: 1>, scalar_prefetch = 0 : i64, scratch_operands = 0 : i64, tpu.core_type = #tpu.core_type<tc>, window_params = [{transform_indices = @transform_0, window_bounds = array<i64: 16, 256>}, {pipeline_mode = #tpu.pipeline_mode<synchronous>, transform_indices = @transform_1, window_bounds = array<i64: 256, 128>}, {pipeline_mode = #tpu.pipeline_mode<synchronous>, transform_indices = @transform_2, window_bounds = array<i64: 1, 128>}, {transform_indices = @transform_3, window_bounds = array<i64: 16, 128>}]} {
    %c0 = arith.constant 0 : index
    %c0_0 = arith.constant 0 : index
    %0 = vector.load %arg1[%c0, %c0_0] : memref<16x256xbf16, #tpu.memory_space<vmem>>, vector<16x256xbf16>
    %c0_1 = arith.constant 0 : index
    %c0_2 = arith.constant 0 : index
    %1 = vector.load %arg2[%c0_1, %c0_2] : memref<256x128xbf16, #tpu.memory_space<vmem>>, vector<256x128xbf16>
    %cst = arith.constant dense<0.000000e+00> : vector<16x128xf32>
    %2 = tpu.matmul %0, %1, %cst {dimension_numbers = #tpu.dot_dimension_numbers<[1], [0], [0], [1], [0, 0, 1, 1], [], []>} : vector<16x256xbf16>, vector<256x128xbf16>, vector<16x128xf32> -> vector<16x128xf32>
    %c0_3 = arith.constant 0 : index
    %c0_4 = arith.constant 0 : index
    %3 = vector.load %arg3[%c0_3, %c0_4] : memref<1x128xf32, #tpu.memory_space<vmem>>, vector<1x128xf32>
    %4 = vector.broadcast %3 : vector<1x128xf32> to vector<16x128xf32>
    %5 = arith.addf %2, %4 : vector<16x128xf32>
    %6 = tpu.iota {dimensions = array<i32: 1>} : vector<16x128xi32>
    %c4_i32 = arith.constant 4 : i32
    %7 = vector.broadcast %c4_i32 : i32 to vector<16x128xi32>
    %8 = arith.cmpi slt, %6, %7 : vector<16x128xi32>
    %c4_i32_5 = arith.constant 4 : i32
    %9 = vector.broadcast %c4_i32_5 : i32 to vector<16x128xi32>
    %10 = arith.cmpi sge, %6, %9 : vector<16x128xi32>
    %c10_i32 = arith.constant 10 : i32
    %11 = vector.broadcast %c10_i32 : i32 to vector<16x128xi32>
    %12 = arith.cmpi slt, %6, %11 : vector<16x128xi32>
    %13 = arith.andi %10, %12 : vector<16x128xi1>
    %14 = arith.ori %8, %13 : vector<16x128xi1>
    %cst_6 = arith.constant -1.000000e+30 : f32
    %15 = vector.broadcast %cst_6 : f32 to vector<16x128xf32>
    %16 = arith.select %14, %5, %15 : vector<16x128xi1>, vector<16x128xf32>
    %cst_7 = arith.constant -1.000000e+30 : f32
    %17 = vector.broadcast %cst_7 : f32 to vector<16x128xf32>
    %18 = arith.select %8, %5, %17 : vector<16x128xi1>, vector<16x128xf32>
    %cst_8 = arith.constant dense<0xFF800000> : vector<16xf32>
    %19 = vector.multi_reduction <maximumf>, %18, %cst_8 [1] : vector<16x128xf32> to vector<16xf32>
    %20 = vector.shape_cast %19 : vector<16xf32> to vector<16x1xf32>
    %cst_9 = arith.constant -1.000000e+30 : f32
    %21 = vector.broadcast %cst_9 : f32 to vector<16x128xf32>
    %22 = arith.select %13, %5, %21 : vector<16x128xi1>, vector<16x128xf32>
    %cst_10 = arith.constant dense<0xFF800000> : vector<16xf32>
    %23 = vector.multi_reduction <maximumf>, %22, %cst_10 [1] : vector<16x128xf32> to vector<16xf32>
    %24 = vector.shape_cast %23 : vector<16xf32> to vector<16x1xf32>
    %25 = vector.shape_cast %20 : vector<16x1xf32> to vector<16x1xf32>
    %26 = vector.broadcast %25 : vector<16x1xf32> to vector<16x128xf32>
    %27 = vector.shape_cast %24 : vector<16x1xf32> to vector<16x1xf32>
    %28 = vector.broadcast %27 : vector<16x1xf32> to vector<16x128xf32>
    %29 = arith.select %8, %26, %28 : vector<16x128xi1>, vector<16x128xf32>
    %30 = arith.subf %16, %29 : vector<16x128xf32>
    %31 = math.exp %30 : vector<16x128xf32>
    %cst_11 = arith.constant 0.000000e+00 : f32
    %32 = vector.broadcast %cst_11 : f32 to vector<16x128xf32>
    %33 = arith.select %8, %31, %32 : vector<16x128xi1>, vector<16x128xf32>
    %cst_12 = arith.constant dense<0.000000e+00> : vector<16xf32>
    %34 = vector.multi_reduction <add>, %33, %cst_12 [1] : vector<16x128xf32> to vector<16xf32>
    %35 = vector.shape_cast %34 : vector<16xf32> to vector<16x1xf32>
    %cst_13 = arith.constant 0.000000e+00 : f32
    %36 = vector.broadcast %cst_13 : f32 to vector<16x128xf32>
    %37 = arith.select %13, %31, %36 : vector<16x128xi1>, vector<16x128xf32>
    %cst_14 = arith.constant dense<0.000000e+00> : vector<16xf32>
    %38 = vector.multi_reduction <add>, %37, %cst_14 [1] : vector<16x128xf32> to vector<16xf32>
    %39 = vector.shape_cast %38 : vector<16xf32> to vector<16x1xf32>
    %40 = tpu.reciprocal %35 : vector<16x1xf32> -> vector<16x1xf32>
    %41 = tpu.reciprocal %39 : vector<16x1xf32> -> vector<16x1xf32>
    %cst_15 = arith.constant 0.000000e+00 : f32
    %42 = vector.shape_cast %41 : vector<16x1xf32> to vector<16x1xf32>
    %43 = vector.broadcast %42 : vector<16x1xf32> to vector<16x128xf32>
    %44 = vector.broadcast %cst_15 : f32 to vector<16x128xf32>
    %45 = arith.select %13, %43, %44 : vector<16x128xi1>, vector<16x128xf32>
    %46 = vector.shape_cast %40 : vector<16x1xf32> to vector<16x1xf32>
    %47 = vector.broadcast %46 : vector<16x1xf32> to vector<16x128xf32>
    %48 = arith.select %8, %47, %45 : vector<16x128xi1>, vector<16x128xf32>
    %49 = arith.mulf %31, %48 : vector<16x128xf32>
    %c0_16 = arith.constant 0 : index
    %c0_17 = arith.constant 0 : index
    %50 = vector.load %arg4[%c0_16, %c0_17] : memref<16x128xf32, #tpu.memory_space<vmem>>, vector<16x128xf32>
    tpu.vector_store %arg4[%c0_16, %c0_17], %49 {strides = array<i32>} : memref<16x128xf32, #tpu.memory_space<vmem>>, vector<16x128xf32>,
    return
  }
  func.func @transform_0(%arg0: i32) -> (i32, i32) {
    %c0_i32 = arith.constant 0 : i32
    %c0_i32_0 = arith.constant 0 : i32
    return %arg0, %c0_i32 : i32, i32
  }
  func.func @transform_1(%arg0: i32) -> (i32, i32) {
    %c0_i32 = arith.constant 0 : i32
    %c0_i32_0 = arith.constant 0 : i32
    %c0_i32_1 = arith.constant 0 : i32
    return %c0_i32, %c0_i32_0 : i32, i32
  }
  func.func @transform_2(%arg0: i32) -> (i32, i32) {
    %c0_i32 = arith.constant 0 : i32
    %c0_i32_0 = arith.constant 0 : i32
    %c0_i32_1 = arith.constant 0 : i32
    return %c0_i32, %c0_i32_0 : i32, i32
  }
  func.func @transform_3(%arg0: i32) -> (i32, i32) {
    %c0_i32 = arith.constant 0 : i32
    %c0_i32_0 = arith.constant 0 : i32
    return %arg0, %c0_i32 : i32, i32
  }
}

</mosaic_0001>

<llo_original>
// kernel: tpu_custom_call.1
$region0: #{tpu_custom_call.1}
  #allocation0 [shape = 'u32[]', space=smem, size = 0x4, offset = 0x4, fixed_abs, tag = 'smem constant byte address 0x4 - core index']
  #allocation1 [shape = 'u32[72,128]{1,0:T(1,128)}', space=vmem, size = 0x9000, scoped, tag = 'internal scratch']
  %s0 = inlined_call_operand.hbm [shape: bf16[16,256], index: 0, kind: input, shape index: {}]
  %s1 = inlined_call_operand.hbm [shape: bf16[256,128], index: 1, kind: input, shape index: {}]
  %s2 = inlined_call_operand.vmem [shape: f32[1,128], index: 2, kind: input, shape index: {}]
  %s3 = inlined_call_operand.hbm [shape: f32[16,128], index: 3, kind: output, shape index: {}]
  %s4 = sld [smem:[#allocation0]]
  $region30: #{tpu_custom_call.1} parent=0
    _
  %s6 = ssub.s32 1, %s4
  %s7 = scalar_select 0, %s6, %s4
  $region1: #{tpu_custom_call.1} parent=0
    #allocation2 [shape = 'u8[8192]{0}', space=vmem, size = 0x2000, scoped, tag = 'input window, operand 0, single buffered']
    #allocation3 [shape = 's32[1]{0}', space=sflag, size = 0x4, scoped, tag = 'scoped memory for tpu_custom_call.1']
    #allocation4 [shape = 's32[1]{0}', space=sflag, size = 0x4, scoped, tag = 'scoped memory for tpu_custom_call.1']
    #allocation5 [shape = 'u8[65536]{0}', space=vmem, size = 0x10000, scoped, tag = 'input window, operand 1, single buffered']
    #allocation6 [shape = 's32[1]{0}', space=sflag, size = 0x4, scoped, tag = 'scoped memory for tpu_custom_call.1']
    #allocation7 [shape = 'u8[8192]{0}', space=vmem, size = 0x2000, scoped, tag = 'output window, operand 0, single buffered']
    %8 = vsyncpa [#allocation3], 0
    %9 = vsyncpa [#allocation6], 0
    %10 = vsyncpa [#allocation4], 0
    // Predicated region
    $region2: #{tpu_custom_call.1} parent=1 // pred_check
      _
    $region3: #{tpu_custom_call.1} parent=1 // pred_check_branch
      %12 = sbr.rel (0) target = $region5
    $region4: #{tpu_custom_call.1} parent=1 // pred_region
      %14 = vsyncadd [#allocation3], 0
      %s15 = sshll.u32 %s0, 4
      %s16 = int_to_ptr.hbm [resolvable:$true] %s15
      %s17 = sshll.u32 [#allocation2], 4
      %s18 = int_to_ptr.vmem [resolvable:$true] %s17
      %23 = dma.hbm_to_vmem [thread:$0]  %s16, 256, %s18, [#allocation3], 128, 128, 8
    $region5: #{tpu_custom_call.1} parent=1 // pred_fallthru
      _
    // Predicated region
    $region6: #{tpu_custom_call.1} parent=1 // pred_check
      _
    $region7: #{tpu_custom_call.1} parent=1 // pred_check_branch
      %25 = sbr.rel (0) target = $region9
    $region8: #{tpu_custom_call.1} parent=1 // pred_region
      %27 = vsyncadd [#allocation6], 0
      %s28 = sshll.u32 %s1, 4
      %s29 = int_to_ptr.hbm [resolvable:$true] %s28
      %s30 = sshll.u32 [#allocation5], 4
      %s31 = int_to_ptr.vmem [resolvable:$true] %s30
      %36 = dma.hbm_to_vmem [thread:$0]  %s29, 2048, %s31, [#allocation6], 64, 64, 4
    $region9: #{tpu_custom_call.1} parent=1 // pred_fallthru
      _
    // Predicated region
    $region10: #{tpu_custom_call.1} parent=1 // pred_check
      _
    $region11: #{tpu_custom_call.1} parent=1 // pred_check_branch
      %38 = sbr.rel (0) target = $region13
    $region12: #{tpu_custom_call.1} parent=1 // pred_region
      _
    $region13: #{tpu_custom_call.1} parent=1 // pred_fallthru
      _
    // Predicated region
    $region14: #{tpu_custom_call.1} parent=1 // pred_check
      _
    $region15: #{tpu_custom_call.1} parent=1 // pred_check_branch
      %40 = sbr.rel (0) target = $region17
    $region16: #{tpu_custom_call.1} parent=1 // pred_region
      %42 = dma.done [#allocation3], 256
    $region17: #{tpu_custom_call.1} parent=1 // pred_fallthru
      _
    // Predicated region
    $region18: #{tpu_custom_call.1} parent=1 // pred_check
      _
    $region19: #{tpu_custom_call.1} parent=1 // pred_check_branch
      %44 = sbr.rel (0) target = $region21
    $region20: #{tpu_custom_call.1} parent=1 // pred_region
      %46 = dma.done [#allocation6], 2048
    $region21: #{tpu_custom_call.1} parent=1 // pred_fallthru
      _
    %v47 = vld [vmem:[#allocation2] sm:$0xff]
    %v48 = vld [vmem:[#allocation2 + $0x8] sm:$0xff]
    %v49 = vld [vmem:[#allocation5] sm:$0xf]
    %v50 = vld [vmem:[#allocation5 + $0x4] sm:$0xf]
    %v51 = vld [vmem:[#allocation5 + $0x8] sm:$0xf]
    %v52 = vld [vmem:[#allocation5 + $0xc] sm:$0xf]
    %v53 = vld [vmem:[#allocation5 + $0x10] sm:$0xf]
    %v54 = vld [vmem:[#allocation5 + $0x14] sm:$0xf]
    %v55 = vld [vmem:[#allocation5 + $0x18] sm:$0xf]
    %v56 = vld [vmem:[#allocation5 + $0x1c] sm:$0xf]
    %v57 = vld [vmem:[#allocation5 + $0x20] sm:$0xf]
    %v58 = vld [vmem:[#allocation5 + $0x24] sm:$0xf]
    %v59 = vld [vmem:[#allocation5 + $0x28] sm:$0xf]
    %v60 = vld [vmem:[#allocation5 + $0x2c] sm:$0xf]
    %v61 = vld [vmem:[#allocation5 + $0x30] sm:$0xf]
    %v62 = vld [vmem:[#allocation5 + $0x34] sm:$0xf]
    %v63 = vld [vmem:[#allocation5 + $0x38] sm:$0xf]
    %v64 = vld [vmem:[#allocation5 + $0x3c] sm:$0xf]
    %v65 = vld [vmem:[#allocation5 + $0x40] sm:$0xf]
    %v66 = vld [vmem:[#allocation5 + $0x44] sm:$0xf]
    %v67 = vld [vmem:[#allocation5 + $0x48] sm:$0xf]
    %v68 = vld [vmem:[#allocation5 + $0x4c] sm:$0xf]
    %v69 = vld [vmem:[#allocation5 + $0x50] sm:$0xf]
    %v70 = vld [vmem:[#allocation5 + $0x54] sm:$0xf]
    %v71 = vld [vmem:[#allocation5 + $0x58] sm:$0xf]
    %v72 = vld [vmem:[#allocation5 + $0x5c] sm:$0xf]
    %v73 = vld [vmem:[#allocation5 + $0x60] sm:$0xf]
    %v74 = vld [vmem:[#allocation5 + $0x64] sm:$0xf]
    %v75 = vld [vmem:[#allocation5 + $0x68] sm:$0xf]
    %v76 = vld [vmem:[#allocation5 + $0x6c] sm:$0xf]
    %v77 = vld [vmem:[#allocation5 + $0x70] sm:$0xf]
    %v78 = vld [vmem:[#allocation5 + $0x74] sm:$0xf]
    %v79 = vld [vmem:[#allocation5 + $0x78] sm:$0xf]
    %v80 = vld [vmem:[#allocation5 + $0x7c] sm:$0xf]
    %v81 = vld [vmem:[%s2] sm:$0x1]
    %v83 = vperm.slane %v81, 0
    %v87 = vunpack.c.l.b16 %v47
    %v88 = vunpack.c.h.b16 %v47
    %v89 = vunpack.c.l.b16 %v48
    %v90 = vunpack.c.h.b16 %v48
    %v91 = vpack.c.b16 %v89, %v87
    %v92 = vpack.c.b16 %v90, %v88
    %v127 = vunpack.c.l.b16 %v49
    %v128 = vunpack.c.l.b16 %v50
    %v129 = vunpack.c.l.b16 %v51
    %v130 = vunpack.c.l.b16 %v52
    %v131 = vunpack.c.l.b16 %v53
    %v132 = vunpack.c.l.b16 %v54
    %v133 = vunpack.c.l.b16 %v55
    %v134 = vunpack.c.l.b16 %v56
    %v135 = vunpack.c.l.b16 %v57
    %v136 = vunpack.c.l.b16 %v58
    %v137 = vunpack.c.l.b16 %v59
    %v138 = vunpack.c.l.b16 %v60
    %v139 = vunpack.c.l.b16 %v61
    %v140 = vunpack.c.l.b16 %v62
    %v141 = vunpack.c.l.b16 %v63
    %v142 = vunpack.c.l.b16 %v64
    %v143 = vunpack.c.l.b16 %v65
    %v144 = vunpack.c.l.b16 %v66
    %v145 = vunpack.c.l.b16 %v67
    %v146 = vunpack.c.l.b16 %v68
    %v147 = vunpack.c.l.b16 %v69
    %v148 = vunpack.c.l.b16 %v70
    %v149 = vunpack.c.l.b16 %v71
    %v150 = vunpack.c.l.b16 %v72
    %v151 = vunpack.c.l.b16 %v73
    %v152 = vunpack.c.l.b16 %v74
    %v153 = vunpack.c.l.b16 %v75
    %v154 = vunpack.c.l.b16 %v76
    %v155 = vunpack.c.l.b16 %v77
    %v156 = vunpack.c.l.b16 %v78
    %v157 = vunpack.c.l.b16 %v79
    %v158 = vunpack.c.l.b16 %v80
    %v159 = vpack.c.b16 %v128, %v127
    %v160 = vpack.c.b16 %v130, %v129
    %v161 = vpack.c.b16 %v132, %v131
    %v162 = vpack.c.b16 %v134, %v133
    %v163 = vpack.c.b16 %v136, %v135
    %v164 = vpack.c.b16 %v138, %v137
    %v165 = vpack.c.b16 %v140, %v139
    %v166 = vpack.c.b16 %v142, %v141
    %v167 = vpack.c.b16 %v144, %v143
    %v168 = vpack.c.b16 %v146, %v145
    %v169 = vpack.c.b16 %v148, %v147
    %v170 = vpack.c.b16 %v150, %v149
    %v171 = vpack.c.b16 %v152, %v151
    %v172 = vpack.c.b16 %v154, %v153
    %v173 = vpack.c.b16 %v156, %v155
    %v174 = vpack.c.b16 %v158, %v157
    %191 = vmatpush.bf16.msra.mxu0 %v166
    %192 = vmatpush.bf16.msra.mxu0 %v165
    %193 = vmatpush.bf16.msra.mxu0 %v164
    %194 = vmatpush.bf16.msra.mxu0 %v163
    %195 = vmatpush.bf16.msra.mxu0 %v162
    %196 = vmatpush.bf16.msra.mxu0 %v161
    %197 = vmatpush.bf16.msra.mxu0 %v160
    %198 = vmatpush.bf16.msra.mxu0 %v159
    %199 = vmatmul.bf16.gmra.mxu0 %v91
    %v200 = vpop.f32.mrf.mxu0
    %v201 = vadd.f32 %v83, %v200
    %v202 = vpop.f32.mrf.mxu0
    %v203 = vadd.f32 %v83, %v202
    %204 = vdwg.mxu0
    %205 = vmatpush.bf16.msra.mxu0 %v174
    %206 = vmatpush.bf16.msra.mxu0 %v173
    %207 = vmatpush.bf16.msra.mxu0 %v172
    %208 = vmatpush.bf16.msra.mxu0 %v171
    %209 = vmatpush.bf16.msra.mxu0 %v170
    %210 = vmatpush.bf16.msra.mxu0 %v169
    %211 = vmatpush.bf16.msra.mxu0 %v168
    %212 = vmatpush.bf16.msra.mxu0 %v167
    %213 = vmatmul.bf16.gmra.mxu0 %v92
    %v214 = vpop.f32.mrf.mxu0
    %v215 = vadd.f32 %v201, %v214
    %v216 = vpop.f32.mrf.mxu0
    %v217 = vadd.f32 %v203, %v216
    %218 = vdwg.mxu0
    %v219 = vlaneseq
    %v220 = vand.u32 %v219, 127
    %vm221 = vcmp.lt.s32.totalorder %v220, 4
    %vm222 = vcmp.ge.s32.totalorder %v220, 4
    %vm223 = vcmp.lt.s32.totalorder %v220, 10
    %vm224 = vmand %vm222, %vm223
    %vm225 = vmor %vm221, %vm224
    %v226 = vsel %vm225, %v215, -1e+30
    %v227 = vsel %vm225, %v217, -1e+30
    %v228 = vsel %vm221, %v215, -1e+30
    %v229 = vsel %vm221, %v217, -1e+30
    %230 = vmax.xlane.f32.xlu0 %v228
    %v231 = vpop.xlane.xlu0 %230
    %232 = vmax.xlane.f32.xlu0 %v229
    %v233 = vpop.xlane.xlu0 %232
    %v234 = vsel %vm224, %v215, -1e+30
    %v235 = vsel %vm224, %v217, -1e+30
    %236 = vmax.xlane.f32.xlu0 %v234
    %v237 = vpop.xlane.xlu0 %236
    %238 = vmax.xlane.f32.xlu0 %v235
    %v239 = vpop.xlane.xlu0 %238
    %v240 = vsel %vm221, %v231, %v237
    %v241 = vsel %vm221, %v233, %v239
    %v242 = vsub.f32 %v226, %v240
    %v243 = vsub.f32 %v227, %v241
    %v244 = vmul.f32 %v242, 1.442695
    %v245 = vpow.pop %v244
    %v246 = vmul.f32 %v243, 1.442695
    %v247 = vpow.pop %v246
    %v248 = vsel %vm221, %v245, 0.0
    %v249 = vsel %vm221, %v247, 0.0
    %250 = vadd.xlane.f32.xlu0 %v248
    %v251 = vpop.xlane.xlu0 %250
    %252 = vadd.xlane.f32.xlu0 %v249
    %v253 = vpop.xlane.xlu0 %252
    %v254 = vsel %vm224, %v245, 0.0
    %v255 = vsel %vm224, %v247, 0.0
    %256 = vadd.xlane.f32.xlu0 %v254
    %v257 = vpop.xlane.xlu0 %256
    %258 = vadd.xlane.f32.xlu0 %v255
    %v259 = vpop.xlane.xlu0 %258
    %v260 = vrcp.pop %v251
    %v261 = vmul.f32 %v251, %v260
    %v262 = vsub.f32 1.0, %v261
    %v263 = vmul.f32 %v260, %v262
    %v264 = vadd.f32 %v260, %v263
    %vm265 = vweird.f32 %v251
    %vm266 = vweird.f32 %v260
    %vm267 = vmor %vm265, %vm266
    %v268 = vsel %vm267, %v260, %v264
    %v269 = vand.u32 2147483647, %v251
    %vm270 = vcmp.eq.f32.partialorder %v269, 8.507059e+37
    %v271 = vand.u32 %v251, 2147483648
    %v272 = vor.u32 1.1754944e-38, %v271
    %v273 = vsel %vm270, %v272, %v268
    %v274 = vrcp.pop %v253
    %v275 = vmul.f32 %v253, %v274
    %v276 = vsub.f32 1.0, %v275
    %v277 = vmul.f32 %v274, %v276
    %v278 = vadd.f32 %v274, %v277
    %vm279 = vweird.f32 %v253
    %vm280 = vweird.f32 %v274
    %vm281 = vmor %vm279, %vm280
    %v282 = vsel %vm281, %v274, %v278
    %v283 = vand.u32 2147483647, %v253
    %vm284 = vcmp.eq.f32.partialorder %v283, 8.507059e+37
    %v285 = vand.u32 %v253, 2147483648
    %v286 = vor.u32 1.1754944e-38, %v285
    %v287 = vsel %vm284, %v286, %v282
    %v288 = vrcp.pop %v257
    %v289 = vmul.f32 %v257, %v288
    %v290 = vsub.f32 1.0, %v289
    %v291 = vmul.f32 %v288, %v290
    %v292 = vadd.f32 %v288, %v291
    %vm293 = vweird.f32 %v257
    %vm294 = vweird.f32 %v288
    %vm295 = vmor %vm293, %vm294
    %v296 = vsel %vm295, %v288, %v292
    %v297 = vand.u32 2147483647, %v257
    %vm298 = vcmp.eq.f32.partialorder %v297, 8.507059e+37
    %v299 = vand.u32 %v257, 2147483648
    %v300 = vor.u32 1.1754944e-38, %v299
    %v301 = vsel %vm298, %v300, %v296
    %v302 = vrcp.pop %v259
    %v303 = vmul.f32 %v259, %v302
    %v304 = vsub.f32 1.0, %v303
    %v305 = vmul.f32 %v302, %v304
    %v306 = vadd.f32 %v302, %v305
    %vm307 = vweird.f32 %v259
    %vm308 = vweird.f32 %v302
    %vm309 = vmor %vm307, %vm308
    %v310 = vsel %vm309, %v302, %v306
    %v311 = vand.u32 2147483647, %v259
    %vm312 = vcmp.eq.f32.partialorder %v311, 8.507059e+37
    %v313 = vand.u32 %v259, 2147483648
    %v314 = vor.u32 1.1754944e-38, %v313
    %v315 = vsel %vm312, %v314, %v310
    %v316 = vsel %vm224, %v301, 0.0
    %v317 = vsel %vm224, %v315, 0.0
    %v318 = vsel %vm221, %v273, %v316
    %v319 = vsel %vm221, %v287, %v317
    %v320 = vmul.f32 %v245, %v318
    %v321 = vmul.f32 %v247, %v319
    %322 = vst [vmem:[#allocation7] sm:$0xff] %v320
    %323 = vst [vmem:[#allocation7 + $0x8] sm:$0xff] %v321
    // Predicated region
    $region22: #{tpu_custom_call.1} parent=1 // pred_check
      _
    $region23: #{tpu_custom_call.1} parent=1 // pred_check_branch
      %325 = sbr.rel (0) target = $region25
    $region24: #{tpu_custom_call.1} parent=1 // pred_region
      %327 = vsyncadd [#allocation4], 0
      %s328 = sshll.u32 [#allocation7], 4
      %s329 = int_to_ptr.vmem [resolvable:$true] %s328
      %s330 = sshll.u32 %s3, 4
      %s331 = int_to_ptr.hbm [resolvable:$true] %s330
      %336 = dma.vmem_to_hbm [thread:$0]  %s329, 256, %s331, [#allocation4], 128, 128, 8
    $region25: #{tpu_custom_call.1} parent=1 // pred_fallthru
      _
    // Predicated region
    $region26: #{tpu_custom_call.1} parent=1 // pred_check
      _
    $region27: #{tpu_custom_call.1} parent=1 // pred_check_branch
      %338 = sbr.rel (0) target = $region29
    $region28: #{tpu_custom_call.1} parent=1 // pred_region
      %340 = dma.done [#allocation4], 256
    $region29: #{tpu_custom_call.1} parent=1 // pred_fallthru
      _
    %341 = vsyncpa [#allocation3], 1
    %342 = vsyncpa [#allocation6], 1
    %343 = vsyncpa [#allocation4], 1

</llo_original>
